<compile_context>
chip_gen: v7x
topology: tpu7x:2x2x1
jax: 0.10.0
libtpu: 0.0.40
codegen_flags: <defaults>
</compile_context>

<pallas_src>
import math

import jax
import jax.numpy as jnp
from jax import lax
from jax.experimental import pallas as pl
from jax.experimental.pallas import tpu as pltpu


def _round_up(v, m):
    return ((v + m - 1) // m) * m


def _pick_tile(dim_p, target):
    """Largest multiple-of-128 divisor of dim_p that is <= target (dim_p is a multiple of 128)."""
    best = 128
    d = 128
    limit = min(dim_p, target)
    while d <= limit:
        if dim_p % d == 0:
            best = d
        d += 128
    return best


# --------------------------------- kernels ---------------------------------

def _noisy_train_kernel(x_ref, xsig_ref, wmu_ref, wsig_ref, eps_out_ref, bias_ref,
                        o_ref, mu_acc, sig_acc):
    """out = x@Wmu.T + eps_out * ((x*eps_in)@Wsig.T) + bias, accumulated over k tiles."""
    k = pl.program_id(2)

    @pl.when(k == 0)
    def _():
        mu_acc[...] = jnp.zeros_like(mu_acc)
        sig_acc[...] = jnp.zeros_like(sig_acc)

    dn = (((1,), (1,)), ((), ()))   # contract dim 1 of x with dim 1 of W -> x @ W.T (no XLU transpose)
    mu_acc[...] += lax.dot_general(x_ref[...], wmu_ref[...],
                                   dimension_numbers=dn,
                                   preferred_element_type=jnp.float32)
    sig_acc[...] += lax.dot_general(xsig_ref[...], wsig_ref[...],
                                    dimension_numbers=dn,
                                    preferred_element_type=jnp.float32)

    @pl.when(k == pl.num_programs(2) - 1)
    def _():
        # f32 epilogue: (1,tn) rows broadcast over the (tb,tn) accumulators.
        o_ref[...] = (mu_acc[...] + eps_out_ref[...] * sig_acc[...]
                      + bias_ref[...]).astype(o_ref.dtype)


def _mu_kernel(x_ref, wmu_ref, bias_ref, o_ref, acc):
    """Eval path: plain x @ W_mu.T + b_mu (no epsilon / sigma streams)."""
    k = pl.program_id(2)

    @pl.when(k == 0)
    def _():
        acc[...] = jnp.zeros_like(acc)

    acc[...] += lax.dot_general(x_ref[...], wmu_ref[...],
                                dimension_numbers=(((1,), (1,)), ((), ())),
                                preferred_element_type=jnp.float32)

    @pl.when(k == pl.num_programs(2) - 1)
    def _():
        o_ref[...] = (acc[...] + bias_ref[...]).astype(o_ref.dtype)


# ------------------------- parameter preparation (hoisted) -------------------------

def prepare_noisy_linear(params, compute_dtype=jnp.bfloat16):
    """Pad + cast the heavy (N,K) weights ONCE (call at init / after reset_noise, not per forward)."""
    wmu, wsig, eps_in, eps_out, bmu, bsig, beps = params
    N, K = wmu.shape
    Kp = _round_up(K, 128)
    Np = _round_up(N, 128)

    f32 = jnp.float32
    prep = {
        "N": N, "K": K, "Np": Np, "Kp": Kp,
        "compute_dtype": compute_dtype,
        # MXU operand streams (bf16 by default -> half the dominant HBM traffic).
        "wmu": jnp.pad(wmu.astype(f32), ((0, Np - N), (0, Kp - K))).astype(compute_dtype),
        "wsig": jnp.pad(wsig.astype(f32), ((0, Np - N), (0, Kp - K))).astype(compute_dtype),
        # Factorized noise / bias kept in f32 (tiny, used on the VPU only).
        "eps_in": jnp.pad(eps_in.astype(f32), (0, Kp - K)),                          # (Kp,)
        "eps_out_row": jnp.pad(eps_out.astype(f32), (0, Np - N)).reshape(1, Np),     # (1, Np)
        "bias_train_row": jnp.pad((bmu + bsig * beps).astype(f32), (0, Np - N)).reshape(1, Np),
        "bias_eval_row": jnp.pad(bmu.astype(f32), (0, Np - N)).reshape(1, Np),
    }
    return prep


# --------------------------------- forward wrapper ---------------------------------

def noisy_linear_forward(x, prep, *, training=True,
                         tile_b=256, tile_n=512, tile_k=512,
                         out_dtype=jnp.float32):
    B, K = x.shape
    assert K == prep["K"], "in_features mismatch"
    N, Np, Kp = prep["N"], prep["Np"], prep["Kp"]
    compute_dtype = prep["compute_dtype"]

    # Batch padded to sublane multiple; tiled when large so VMEM stays bounded.
    Bp = _round_up(B, 8)
    if Bp <= tile_b:
        tb = Bp
    else:
        tb = tile_b
        Bp = _round_up(Bp, tb)

    # Divisor tiles (no tile-multiple padding waste).
    tk = _pick_tile(Kp, tile_k)
    tn = _pick_tile(Np, tile_n)
    if Np // tn == 1 and Np >= 256:
        # Ensure >=2 blocks on the parallel N axis so v7x's 2 TensorCores both get work.
        tn = _pick_tile(Np, Np // 2)

    grid = (Bp // tb, Np // tn, Kp // tk)   # (batch, N) parallel, K reduction last

    # Per-call activation prep only (tiny): pad, fold eps_in, cast MXU operand.
    xf = jnp.pad(x.astype(jnp.float32), ((0, Bp - B), (0, Kp - K)))
    x_mu = xf.astype(compute_dtype)

    x_spec = pl.BlockSpec((tb, tk), lambda m, n, k: (m, k))
    w_spec = pl.BlockSpec((tn, tk), lambda m, n, k: (n, k))
    row_spec = pl.BlockSpec((1, tn), lambda m, n, k: (0, n))
    out_spec = pl.BlockSpec((tb, tn), lambda m, n, k: (m, n))

    compiler_params = pltpu.CompilerParams(
        dimension_semantics=("parallel", "parallel", "arbitrary"),
        vmem_limit_bytes=48 * 1024 * 1024)   # fits v7x's 64 MiB physical VMEM with headroom
    out_shape = jax.ShapeDtypeStruct((Bp, Np), out_dtype)

    if training:
        x_sig = (xf * prep["eps_in"][None, :]).astype(compute_dtype)
        out_p = pl.pallas_call(
            _noisy_train_kernel,
            out_shape=out_shape,
            grid=grid,
            in_specs=[x_spec, x_spec, w_spec, w_spec, row_spec, row_spec],
            out_specs=out_spec,
            scratch_shapes=[pltpu.VMEM((tb, tn), jnp.float32),
                            pltpu.VMEM((tb, tn), jnp.float32)],
            compiler_params=compiler_params,
        )(x_mu, x_sig, prep["wmu"], prep["wsig"],
          prep["eps_out_row"], prep["bias_train_row"])
    else:
        out_p = pl.pallas_call(
            _mu_kernel,
            out_shape=out_shape,
            grid=grid,
            in_specs=[x_spec, w_spec, row_spec],
            out_specs=out_spec,
            scratch_shapes=[pltpu.VMEM((tb, tn), jnp.float32)],
            compiler_params=compiler_params,
        )(x_mu, prep["wmu"], prep["bias_eval_row"])

    return out_p[:B, :N]


# ------------------- parameter / noise construction (JAX glue) -------------------

def _scale_noise(key, size):
    x = jax.random.normal(key, (size,), dtype=jnp.float32)
    return jnp.sign(x) * jnp.sqrt(jnp.abs(x))


def init_noisy_linear(key, in_features, out_features, std_init=0.4):
    k_wmu, k_bmu, k_ein, k_eout, k_beps = jax.random.split(key, 5)
    mu_range = 1.0 / math.sqrt(in_features)

    weight_mu = jax.random.uniform(k_wmu, (out_features, in_features),
                                   minval=-mu_range, maxval=mu_range, dtype=jnp.float32)
    weight_sigma = jnp.full((out_features, in_features),
                            std_init / math.sqrt(in_features), dtype=jnp.float32)
    bias_mu = jax.random.uniform(k_bmu, (out_features,),
                                 minval=-mu_range, maxval=mu_range, dtype=jnp.float32)
    bias_sigma = jnp.full((out_features,),
                          std_init / math.sqrt(out_features), dtype=jnp.float32)

    # reset_noise(): keep the FACTORIZED vectors; weight_epsilon == outer(eps_out, eps_in)
    eps_in = _scale_noise(k_ein, in_features)
    eps_out = _scale_noise(k_eout, out_features)
    bias_epsilon = _scale_noise(k_beps, out_features)

    return (weight_mu, weight_sigma, eps_in, eps_out, bias_mu, bias_sigma, bias_epsilon)


def reference_forward(x, params, training=True):
    wmu, wsig, eps_in, eps_out, bmu, bsig, beps = params
    if training:
        w = wmu + wsig * jnp.outer(eps_out, eps_in)
        b = bmu + bsig * beps
    else:
        w, b = wmu, bmu
    return x @ w.T + b


if __name__ == "__main__":
    key = jax.random.PRNGKey(0)
    k_x, k_p, k_x2, k_p2 = jax.random.split(key, 4)

    batch, in_features, out_features = 4, 32, 16
    x = jax.random.normal(k_x, (batch, in_features), dtype=jnp.float32)
    params = init_noisy_linear(k_p, in_features, out_features, std_init=0.4)

    # Weight pad + cast hoisted out of the forward path (done once per noise reset).
    prep_bf16 = prepare_noisy_linear(params, compute_dtype=jnp.bfloat16)
    prep_f32 = prepare_noisy_linear(params, compute_dtype=jnp.float32)

    # Training path (noisy weights) — bf16 MXU operands, f32 accumulation + epilogue.
    out_tr = jax.block_until_ready(noisy_linear_forward(x, prep_bf16, training=True))
    ref_tr = reference_forward(x, params, training=True)
    assert out_tr.shape == (batch, out_features)
    assert jnp.allclose(out_tr, ref_tr, atol=5e-2, rtol=5e-2), "train-mode (bf16) mismatch"

    # Eval path (mu-only kernel, no sigma/epsilon streams).
    out_ev = jax.block_until_ready(noisy_linear_forward(x, prep_bf16, training=False))
    ref_ev = reference_forward(x, params, training=False)
    assert jnp.allclose(out_ev, ref_ev, atol=5e-2, rtol=5e-2), "eval-mode mismatch"

    # f32 compute path (exactness option for callers needing PyTorch-tight parity).
    out_f32 = jax.block_until_ready(noisy_linear_forward(x, prep_f32, training=True))
    assert jnp.allclose(out_f32, ref_tr, atol=5e-3, rtol=5e-3), "train-mode (f32) mismatch"

    # Non-128-aligned shapes exercise padding + divisor tile selection.
    b2, k2, n2 = 5, 40, 24
    x2 = jax.random.normal(k_x2, (b2, k2), dtype=jnp.float32)
    params2 = init_noisy_linear(k_p2, k2, n2, std_init=0.4)
    prep2 = prepare_noisy_linear(params2, compute_dtype=jnp.bfloat16)
    out2 = jax.block_until_ready(noisy_linear_forward(x2, prep2, training=True))
    ref2 = reference_forward(x2, params2, training=True)
    assert out2.shape == (b2, n2)
    assert jnp.allclose(out2, ref2, atol=5e-2, rtol=5e-2), "odd-shape mismatch"

    print("KERNEL_OK")
</pallas_src>

<mosaic_0001>
module attributes {stable_mosaic.version = 11 : i64} {
  func.func @_noisy_train_kernel(%arg0: i32, %arg1: i32, %arg2: i32, %arg3: memref<8x128xbf16, #tpu.memory_space<vmem>>, %arg4: memref<8x128xbf16, #tpu.memory_space<vmem>>, %arg5: memref<128x128xbf16, #tpu.memory_space<vmem>>, %arg6: memref<128x128xbf16, #tpu.memory_space<vmem>>, %arg7: memref<1x128xf32, #tpu.memory_space<vmem>>, %arg8: memref<1x128xf32, #tpu.memory_space<vmem>>, %arg9: memref<8x128xf32, #tpu.memory_space<vmem>>, %arg10: memref<8x128xf32, #tpu.memory_space<vmem>>, %arg11: memref<8x128xf32, #tpu.memory_space<vmem>>) attributes {dimension_semantics = [#tpu.dimension_semantics<parallel>, #tpu.dimension_semantics<parallel>, #tpu.dimension_semantics<arbitrary>], iteration_bounds = array<i64: 1, 1, 1>, scalar_prefetch = 0 : i64, scratch_operands = 2 : i64, tpu.core_type = #tpu.core_type<tc>, window_params = [{transform_indices = @transform_0, window_bounds = array<i64: 8, 128>}, {transform_indices = @transform_1, window_bounds = array<i64: 8, 128>}, {transform_indices = @transform_2, window_bounds = array<i64: 128, 128>}, {transform_indices = @transform_3, window_bounds = array<i64: 128, 128>}, {transform_indices = @transform_4, window_bounds = array<i64: 1, 128>}, {transform_indices = @transform_5, window_bounds = array<i64: 1, 128>}, {transform_indices = @transform_6, window_bounds = array<i64: 8, 128>}]} {
    %c0_i32 = arith.constant 0 : i32
    %0 = arith.cmpi eq, %arg2, %c0_i32 : i32
    %1 = arith.extui %0 : i1 to i32
    %c0_i32_0 = arith.constant 0 : i32
    %2 = arith.cmpi ne, %1, %c0_i32_0 : i32
    scf.if %2 {
      %cst_19 = arith.constant 0.000000e+00 : f32
      %18 = vector.broadcast %cst_19 : f32 to vector<8x128xf32>
      %c0_20 = arith.constant 0 : index
      %c0_21 = arith.constant 0 : index
      %19 = vector.load %arg10[%c0_20, %c0_21] : memref<8x128xf32, #tpu.memory_space<vmem>>, vector<8x128xf32>
      tpu.vector_store %arg10[%c0_20, %c0_21], %18 {strides = array<i32>} : memref<8x128xf32, #tpu.memory_space<vmem>>, vector<8x128xf32>,
      %cst_22 = arith.constant 0.000000e+00 : f32
      %20 = vector.broadcast %cst_22 : f32 to vector<8x128xf32>
      %c0_23 = arith.constant 0 : index
      %c0_24 = arith.constant 0 : index
      %21 = vector.load %arg11[%c0_23, %c0_24] : memref<8x128xf32, #tpu.memory_space<vmem>>, vector<8x128xf32>
      tpu.vector_store %arg11[%c0_23, %c0_24], %20 {strides = array<i32>} : memref<8x128xf32, #tpu.memory_space<vmem>>, vector<8x128xf32>,
    } else {
    }
    %c0 = arith.constant 0 : index
    %c0_1 = arith.constant 0 : index
    %3 = vector.load %arg10[%c0, %c0_1] : memref<8x128xf32, #tpu.memory_space<vmem>>, vector<8x128xf32>
    %c0_2 = arith.constant 0 : index
    %c0_3 = arith.constant 0 : index
    %4 = vector.load %arg3[%c0_2, %c0_3] : memref<8x128xbf16, #tpu.memory_space<vmem>>, vector<8x128xbf16>
    %c0_4 = arith.constant 0 : index
    %c0_5 = arith.constant 0 : index
    %5 = vector.load %arg5[%c0_4, %c0_5] : memref<128x128xbf16, #tpu.memory_space<vmem>>, vector<128x128xbf16>
    %cst = arith.constant dense<0.000000e+00> : vector<8x128xf32>
    %6 = tpu.matmul %4, %5, %cst {dimension_numbers = #tpu.dot_dimension_numbers<[1], [1], [0], [0], [0, 0, 1, 0], [], []>} : vector<8x128xbf16>, vector<128x128xbf16>, vector<8x128xf32> -> vector<8x128xf32>
    %7 = arith.addf %3, %6 : vector<8x128xf32>
    %c0_6 = arith.constant 0 : index
    %c0_7 = arith.constant 0 : index
    %8 = vector.load %arg10[%c0_6, %c0_7] : memref<8x128xf32, #tpu.memory_space<vmem>>, vector<8x128xf32>
    tpu.vector_store %arg10[%c0_6, %c0_7], %7 {strides = array<i32>} : memref<8x128xf32, #tpu.memory_space<vmem>>, vector<8x128xf32>,
    %c0_8 = arith.constant 0 : index
    %c0_9 = arith.constant 0 : index
    %9 = vector.load %arg11[%c0_8, %c0_9] : memref<8x128xf32, #tpu.memory_space<vmem>>, vector<8x128xf32>
    %c0_10 = arith.constant 0 : index
    %c0_11 = arith.constant 0 : index
    %10 = vector.load %arg4[%c0_10, %c0_11] : memref<8x128xbf16, #tpu.memory_space<vmem>>, vector<8x128xbf16>
    %c0_12 = arith.constant 0 : index
    %c0_13 = arith.constant 0 : index
    %11 = vector.load %arg6[%c0_12, %c0_13] : memref<128x128xbf16, #tpu.memory_space<vmem>>, vector<128x128xbf16>
    %cst_14 = arith.constant dense<0.000000e+00> : vector<8x128xf32>
    %12 = tpu.matmul %10, %11, %cst_14 {dimension_numbers = #tpu.dot_dimension_numbers<[1], [1], [0], [0], [0, 0, 1, 0], [], []>} : vector<8x128xbf16>, vector<128x128xbf16>, vector<8x128xf32> -> vector<8x128xf32>
    %13 = arith.addf %9, %12 : vector<8x128xf32>
    %c0_15 = arith.constant 0 : index
    %c0_16 = arith.constant 0 : index
    %14 = vector.load %arg11[%c0_15, %c0_16] : memref<8x128xf32, #tpu.memory_space<vmem>>, vector<8x128xf32>
    tpu.vector_store %arg11[%c0_15, %c0_16], %13 {strides = array<i32>} : memref<8x128xf32, #tpu.memory_space<vmem>>, vector<8x128xf32>,
    %c0_i32_17 = arith.constant 0 : i32
    %15 = arith.cmpi eq, %arg2, %c0_i32_17 : i32
    %16 = arith.extui %15 : i1 to i32
    %c0_i32_18 = arith.constant 0 : i32
    %17 = arith.cmpi ne, %16, %c0_i32_18 : i32
    scf.if %17 {
      %c0_19 = arith.constant 0 : index
      %c0_20 = arith.constant 0 : index
      %18 = vector.load %arg10[%c0_19, %c0_20] : memref<8x128xf32, #tpu.memory_space<vmem>>, vector<8x128xf32>
      %c0_21 = arith.constant 0 : index
      %c0_22 = arith.constant 0 : index
      %19 = vector.load %arg7[%c0_21, %c0_22] : memref<1x128xf32, #tpu.memory_space<vmem>>, vector<1x128xf32>
      %c0_23 = arith.constant 0 : index
      %c0_24 = arith.constant 0 : index
      %20 = vector.load %arg11[%c0_23, %c0_24] : memref<8x128xf32, #tpu.memory_space<vmem>>, vector<8x128xf32>
      %21 = vector.broadcast %19 : vector<1x128xf32> to vector<8x128xf32>
      %22 = arith.mulf %21, %20 : vector<8x128xf32>
      %23 = arith.addf %18, %22 : vector<8x128xf32>
      %c0_25 = arith.constant 0 : index
      %c0_26 = arith.constant 0 : index
      %24 = vector.load %arg8[%c0_25, %c0_26] : memref<1x128xf32, #tpu.memory_space<vmem>>, vector<1x128xf32>
      %25 = vector.broadcast %24 : vector<1x128xf32> to vector<8x128xf32>
      %26 = arith.addf %23, %25 : vector<8x128xf32>
      %c0_27 = arith.constant 0 : index
      %c0_28 = arith.constant 0 : index
      %27 = vector.load %arg9[%c0_27, %c0_28] : memref<8x128xf32, #tpu.memory_space<vmem>>, vector<8x128xf32>
      tpu.vector_store %arg9[%c0_27, %c0_28], %26 {strides = array<i32>} : memref<8x128xf32, #tpu.memory_space<vmem>>, vector<8x128xf32>,
    } else {
    }
    return
  }
  func.func @transform_0(%arg0: i32, %arg1: i32, %arg2: i32) -> (i32, i32) {
    %c0_i32 = arith.constant 0 : i32
    return %arg0, %arg2 : i32, i32
  }
  func.func @transform_1(%arg0: i32, %arg1: i32, %arg2: i32) -> (i32, i32) {
    %c0_i32 = arith.constant 0 : i32
    return %arg0, %arg2 : i32, i32
  }
  func.func @transform_2(%arg0: i32, %arg1: i32, %arg2: i32) -> (i32, i32) {
    %c0_i32 = arith.constant 0 : i32
    return %arg1, %arg2 : i32, i32
  }
  func.func @transform_3(%arg0: i32, %arg1: i32, %arg2: i32) -> (i32, i32) {
    %c0_i32 = arith.constant 0 : i32
    return %arg1, %arg2 : i32, i32
  }
  func.func @transform_4(%arg0: i32, %arg1: i32, %arg2: i32) -> (i32, i32) {
    %c0_i32 = arith.constant 0 : i32
    %c0_i32_0 = arith.constant 0 : i32
    return %c0_i32, %arg1 : i32, i32
  }
  func.func @transform_5(%arg0: i32, %arg1: i32, %arg2: i32) -> (i32, i32) {
    %c0_i32 = arith.constant 0 : i32
    %c0_i32_0 = arith.constant 0 : i32
    return %c0_i32, %arg1 : i32, i32
  }
  func.func @transform_6(%arg0: i32, %arg1: i32, %arg2: i32) -> (i32, i32) {
    %c0_i32 = arith.constant 0 : i32
    return %arg0, %arg1 : i32, i32
  }
}

</mosaic_0001>

<llo_original>
// kernel: tpu_custom_call.1
$region0: #{tpu_custom_call.1}
  #allocation0 [shape = 'u32[]', space=smem, size = 0x4, offset = 0x4, fixed_abs, tag = 'smem constant byte address 0x4 - core index']
  #allocation1 [shape = 'u32[144,128]{1,0:T(1,128)}', space=vmem, size = 0x12000, scoped, tag = 'internal scratch']
  #allocation2 [shape = 'f32[8,128]{1,0:T(8,128)}', space=vmem, size = 0x1000, scoped, tag = 'scratch operand']
  #allocation3 [shape = 'f32[8,128]{1,0:T(8,128)}', space=vmem, size = 0x1000, scoped, tag = 'scratch operand']
  %s0 = inlined_call_operand.hbm [shape: bf16[8,128], index: 0, kind: input, shape index: {}]
  %s1 = inlined_call_operand.hbm [shape: bf16[8,128], index: 1, kind: input, shape index: {}]
  %s2 = inlined_call_operand.hbm [shape: bf16[128,128], index: 2, kind: input, shape index: {}]
  %s3 = inlined_call_operand.hbm [shape: bf16[128,128], index: 3, kind: input, shape index: {}]
  %s4 = inlined_call_operand.vmem [shape: f32[1,128], index: 4, kind: input, shape index: {}]
  %s5 = inlined_call_operand.vmem [shape: f32[1,128], index: 5, kind: input, shape index: {}]
  %s6 = inlined_call_operand.hbm [shape: f32[8,128], index: 6, kind: output, shape index: {}]
  %s7 = sld [smem:[#allocation0]]
  $region58: #{tpu_custom_call.1} parent=0
    _
  %s9 = ssub.s32 1, %s7
  %s10 = scalar_select 0, %s9, %s7
  $region1: #{tpu_custom_call.1} parent=0
    #allocation4 [shape = 'u8[2048]{0}', space=vmem, size = 0x800, scoped, tag = 'input window, operand 0, single buffered']
    #allocation5 [shape = 's32[1]{0}', space=sflag, size = 0x4, scoped, tag = 'scoped memory for tpu_custom_call.1']
    #allocation6 [shape = 's32[1]{0}', space=sflag, size = 0x4, scoped, tag = 'scoped memory for tpu_custom_call.1']
    #allocation7 [shape = 'u8[2048]{0}', space=vmem, size = 0x800, scoped, tag = 'input window, operand 1, single buffered']
    #allocation8 [shape = 's32[1]{0}', space=sflag, size = 0x4, scoped, tag = 'scoped memory for tpu_custom_call.1']
    #allocation9 [shape = 'u8[32768]{0}', space=vmem, size = 0x8000, scoped, tag = 'input window, operand 2, single buffered']
    #allocation10 [shape = 'u8[32768]{0}', space=vmem, size = 0x8000, scoped, tag = 'input window, operand 3, single buffered']
    #allocation11 [shape = 's32[1]{0}', space=sflag, size = 0x4, scoped, tag = 'scoped memory for tpu_custom_call.1']
    #allocation12 [shape = 'u8[4096]{0}', space=vmem, size = 0x1000, scoped, tag = 'output window, operand 0, single buffered']
    %11 = vsyncpa [#allocation5], 0
    %12 = vsyncpa [#allocation8], 0
    %13 = vsyncpa [#allocation11], 0
    %14 = vsyncpa [#allocation6], 0
    // Predicated region
    $region2: #{tpu_custom_call.1} parent=1 // pred_check
      _
    $region3: #{tpu_custom_call.1} parent=1 // pred_check_branch
      %16 = sbr.rel (0) target = $region5
    $region4: #{tpu_custom_call.1} parent=1 // pred_region
      %s18 = ssub.s32 64, 64
      %19 = vsyncadd [#allocation5], %s18
      %s21 = sshll.u32 [#allocation4], 4
      %s22 = int_to_ptr.vmem [resolvable:$true] %s21
      %24 = dma.hbm_to_vmem [thread:$0]  %s0, 64, %s22, [#allocation5]
    $region5: #{tpu_custom_call.1} parent=1 // pred_fallthru
      _
    // Predicated region
    $region6: #{tpu_custom_call.1} parent=1 // pred_check
      _
    $region7: #{tpu_custom_call.1} parent=1 // pred_check_branch
      %26 = sbr.rel (0) target = $region9
    $region8: #{tpu_custom_call.1} parent=1 // pred_region
      %s28 = ssub.s32 64, 64
      %29 = vsyncadd [#allocation8], %s28
      %s31 = sshll.u32 [#allocation7], 4
      %s32 = int_to_ptr.vmem [resolvable:$true] %s31
      %34 = dma.hbm_to_vmem [thread:$0]  %s1, 64, %s32, [#allocation8]
    $region9: #{tpu_custom_call.1} parent=1 // pred_fallthru
      _
    // Predicated region
    $region10: #{tpu_custom_call.1} parent=1 // pred_check
      _
    $region11: #{tpu_custom_call.1} parent=1 // pred_check_branch
      %36 = sbr.rel (0) target = $region13
    $region12: #{tpu_custom_call.1} parent=1 // pred_region
      %s38 = ssub.s32 1024, 1024
      %39 = vsyncadd [#allocation8], %s38
      %s40 = sshll.u32 [#allocation9], 4
      %s41 = int_to_ptr.vmem [resolvable:$true] %s40
      %46 = dma.hbm_to_vmem [thread:$0]  %s2, 1024, %s41, [#allocation8], 64, 64, 4
    $region13: #{tpu_custom_call.1} parent=1 // pred_fallthru
      _
    // Predicated region
    $region14: #{tpu_custom_call.1} parent=1 // pred_check
      _
    $region15: #{tpu_custom_call.1} parent=1 // pred_check_branch
      %48 = sbr.rel (0) target = $region17
    $region16: #{tpu_custom_call.1} parent=1 // pred_region
      %s50 = ssub.s32 1024, 1024
      %51 = vsyncadd [#allocation11], %s50
      %s52 = sshll.u32 [#allocation10], 4
      %s53 = int_to_ptr.vmem [resolvable:$true] %s52
      %58 = dma.hbm_to_vmem [thread:$0]  %s3, 1024, %s53, [#allocation11], 64, 64, 4
    $region17: #{tpu_custom_call.1} parent=1 // pred_fallthru
      _
    // Predicated region
    $region18: #{tpu_custom_call.1} parent=1 // pred_check
      _
    $region19: #{tpu_custom_call.1} parent=1 // pred_check_branch
      %60 = sbr.rel (0) target = $region21
    $region20: #{tpu_custom_call.1} parent=1 // pred_region
      _
    $region21: #{tpu_custom_call.1} parent=1 // pred_fallthru
      _
    // Predicated region
    $region22: #{tpu_custom_call.1} parent=1 // pred_check
      _
    $region23: #{tpu_custom_call.1} parent=1 // pred_check_branch
      %62 = sbr.rel (0) target = $region25
    $region24: #{tpu_custom_call.1} parent=1 // pred_region
      _
    $region25: #{tpu_custom_call.1} parent=1 // pred_fallthru
      _
    // Predicated region
    $region26: #{tpu_custom_call.1} parent=1 // pred_check
      _
    $region27: #{tpu_custom_call.1} parent=1 // pred_check_branch
      %64 = sbr.rel (0) target = $region29
    $region28: #{tpu_custom_call.1} parent=1 // pred_region
      %65 = dma.done [#allocation5], 64
    $region29: #{tpu_custom_call.1} parent=1 // pred_fallthru
      _
    // Predicated region
    $region30: #{tpu_custom_call.1} parent=1 // pred_check
      _
    $region31: #{tpu_custom_call.1} parent=1 // pred_check_branch
      %67 = sbr.rel (0) target = $region33
    $region32: #{tpu_custom_call.1} parent=1 // pred_region
      %68 = dma.done [#allocation8], 64
    $region33: #{tpu_custom_call.1} parent=1 // pred_fallthru
      _
    // Predicated region
    $region34: #{tpu_custom_call.1} parent=1 // pred_check
      _
    $region35: #{tpu_custom_call.1} parent=1 // pred_check_branch
      %70 = sbr.rel (0) target = $region37
    $region36: #{tpu_custom_call.1} parent=1 // pred_region
      %71 = dma.done [#allocation8], 1024
    $region37: #{tpu_custom_call.1} parent=1 // pred_fallthru
      _
    // Predicated region
    $region38: #{tpu_custom_call.1} parent=1 // pred_check
      _
    $region39: #{tpu_custom_call.1} parent=1 // pred_check_branch
      %73 = sbr.rel (0) target = $region41
    $region40: #{tpu_custom_call.1} parent=1 // pred_region
      %74 = dma.done [#allocation11], 1024
    $region41: #{tpu_custom_call.1} parent=1 // pred_fallthru
      _
    %p76 = scmp.eq.s32.totalorder 0, 0
    // Predicated region
    $region42: #{tpu_custom_call.1} parent=1 // pred_check
      %p77 = pneg %p76
    $region43: #{tpu_custom_call.1} parent=1 // pred_check_branch
      %79 = sbr.rel (%p77) target = $region45
    $region44: #{tpu_custom_call.1} parent=1 // pred_region
      %80 = vst [vmem:[#allocation2] sm:$0xff] 0.0
      %81 = vst [vmem:[#allocation3] sm:$0xff] 0.0
    $region45: #{tpu_custom_call.1} parent=1 // pred_fallthru
      _
    %v82 = vld [vmem:[#allocation2] sm:$0xff]
    %v83 = vld [vmem:[#allocation4] sm:$0xf]
    %v84 = vld [vmem:[#allocation9] sm:$0xf]
    %v85 = vld [vmem:[#allocation9 + $0x4] sm:$0xf]
    %v86 = vld [vmem:[#allocation9 + $0x8] sm:$0xf]
    %v87 = vld [vmem:[#allocation9 + $0xc] sm:$0xf]
    %v88 = vld [vmem:[#allocation9 + $0x10] sm:$0xf]
    %v89 = vld [vmem:[#allocation9 + $0x14] sm:$0xf]
    %v90 = vld [vmem:[#allocation9 + $0x18] sm:$0xf]
    %v91 = vld [vmem:[#allocation9 + $0x1c] sm:$0xf]
    %v92 = vld [vmem:[#allocation9 + $0x20] sm:$0xf]
    %v93 = vld [vmem:[#allocation9 + $0x24] sm:$0xf]
    %v94 = vld [vmem:[#allocation9 + $0x28] sm:$0xf]
    %v95 = vld [vmem:[#allocation9 + $0x2c] sm:$0xf]
    %v96 = vld [vmem:[#allocation9 + $0x30] sm:$0xf]
    %v97 = vld [vmem:[#allocation9 + $0x34] sm:$0xf]
    %v98 = vld [vmem:[#allocation9 + $0x38] sm:$0xf]
    %v99 = vld [vmem:[#allocation9 + $0x3c] sm:$0xf]
    %v116 = vunpack.c.l.b16 %v84
    %v117 = vunpack.c.l.b16 %v85
    %v118 = vunpack.c.l.b16 %v86
    %v119 = vunpack.c.l.b16 %v87
    %v120 = vunpack.c.l.b16 %v88
    %v121 = vunpack.c.l.b16 %v89
    %v122 = vunpack.c.l.b16 %v90
    %v123 = vunpack.c.l.b16 %v91
    %v124 = vunpack.c.l.b16 %v92
    %v125 = vunpack.c.l.b16 %v93
    %v126 = vunpack.c.l.b16 %v94
    %v127 = vunpack.c.l.b16 %v95
    %v128 = vunpack.c.l.b16 %v96
    %v129 = vunpack.c.l.b16 %v97
    %v130 = vunpack.c.l.b16 %v98
    %v131 = vunpack.c.l.b16 %v99
    %v132 = vpack.c.b16 %v117, %v116
    %v133 = vpack.c.b16 %v119, %v118
    %v134 = vpack.c.b16 %v121, %v120
    %v135 = vpack.c.b16 %v123, %v122
    %v136 = vpack.c.b16 %v125, %v124
    %v137 = vpack.c.b16 %v127, %v126
    %v138 = vpack.c.b16 %v129, %v128
    %v139 = vpack.c.b16 %v131, %v130
    %148 = vmatprep.subr.bf16.mxu0 0
    %149 = vmatpush1.bf16.xpose.msra.mxu0 %v132
    %150 = vmatprep.subr.bf16.mxu0 0
    %151 = vmatpush1.bf16.xpose.msra.mxu0 %v133
    %152 = vmatprep.subr.bf16.mxu0 0
    %153 = vmatpush1.bf16.xpose.msra.mxu0 %v134
    %154 = vmatprep.subr.bf16.mxu0 0
    %155 = vmatpush1.bf16.xpose.msra.mxu0 %v135
    %156 = vmatprep.subr.bf16.mxu0 0
    %157 = vmatpush1.bf16.xpose.msra.mxu0 %v136
    %158 = vmatprep.subr.bf16.mxu0 0
    %159 = vmatpush1.bf16.xpose.msra.mxu0 %v137
    %160 = vmatprep.subr.bf16.mxu0 0
    %161 = vmatpush1.bf16.xpose.msra.mxu0 %v138
    %162 = vmatprep.subr.bf16.mxu0 0
    %163 = vmatpush1.bf16.xpose.msra.mxu0 %v139
    %164 = vmatprep.subr.bf16.mxu0 0
    %165 = vmatpush1.bf16.xpose.msra.mxu0 0
    %166 = vmatprep.subr.bf16.mxu0 0
    %167 = vmatpush1.bf16.xpose.msra.mxu0 0
    %168 = vmatprep.subr.bf16.mxu0 0
    %169 = vmatpush1.bf16.xpose.msra.mxu0 0
    %170 = vmatprep.subr.bf16.mxu0 0
    %171 = vmatpush1.bf16.xpose.msra.mxu0 0
    %172 = vmatprep.subr.bf16.mxu0 0
    %173 = vmatpush1.bf16.xpose.msra.mxu0 0
    %174 = vmatprep.subr.bf16.mxu0 0
    %175 = vmatpush1.bf16.xpose.msra.mxu0 0
    %176 = vmatprep.subr.bf16.mxu0 0
    %177 = vmatpush1.bf16.xpose.msra.mxu0 0
    %178 = vmatprep.subr.bf16.mxu0 0
    %179 = vmatpush1.bf16.xpose.msra.mxu0 0
    %180 = vmatprep.mubr.bf16.mxu0 0
    %181 = vmatmul.mubr.bf16.gmra.mrb[0].mxu0 %v83
    %v182 = vpop.f32.mrb[0].mxu0
    %v183 = vadd.f32 0.0, %v182
    %v184 = vpop.f32.mrb[0].mxu0
    %v185 = vpop.f32.mrb[0].mxu0
    %v186 = vpop.f32.mrb[0].mxu0
    %187 = vdwg.mxu0
    %v188 = vadd.f32 %v82, %v183
    %189 = vst [vmem:[#allocation2] sm:$0xff] %v188
    %v190 = vld [vmem:[#allocation3] sm:$0xff]
    %v191 = vld [vmem:[#allocation7] sm:$0xf]
    %v192 = vld [vmem:[#allocation10] sm:$0xf]
    %v193 = vld [vmem:[#allocation10 + $0x4] sm:$0xf]
    %v194 = vld [vmem:[#allocation10 + $0x8] sm:$0xf]
    %v195 = vld [vmem:[#allocation10 + $0xc] sm:$0xf]
    %v196 = vld [vmem:[#allocation10 + $0x10] sm:$0xf]
    %v197 = vld [vmem:[#allocation10 + $0x14] sm:$0xf]
    %v198 = vld [vmem:[#allocation10 + $0x18] sm:$0xf]
    %v199 = vld [vmem:[#allocation10 + $0x1c] sm:$0xf]
    %v200 = vld [vmem:[#allocation10 + $0x20] sm:$0xf]
    %v201 = vld [vmem:[#allocation10 + $0x24] sm:$0xf]
    %v202 = vld [vmem:[#allocation10 + $0x28] sm:$0xf]
    %v203 = vld [vmem:[#allocation10 + $0x2c] sm:$0xf]
    %v204 = vld [vmem:[#allocation10 + $0x30] sm:$0xf]
    %v205 = vld [vmem:[#allocation10 + $0x34] sm:$0xf]
    %v206 = vld [vmem:[#allocation10 + $0x38] sm:$0xf]
    %v207 = vld [vmem:[#allocation10 + $0x3c] sm:$0xf]
    %v224 = vunpack.c.l.b16 %v192
    %v225 = vunpack.c.l.b16 %v193
    %v226 = vunpack.c.l.b16 %v194
    %v227 = vunpack.c.l.b16 %v195
    %v228 = vunpack.c.l.b16 %v196
    %v229 = vunpack.c.l.b16 %v197
    %v230 = vunpack.c.l.b16 %v198
    %v231 = vunpack.c.l.b16 %v199
    %v232 = vunpack.c.l.b16 %v200
    %v233 = vunpack.c.l.b16 %v201
    %v234 = vunpack.c.l.b16 %v202
    %v235 = vunpack.c.l.b16 %v203
    %v236 = vunpack.c.l.b16 %v204
    %v237 = vunpack.c.l.b16 %v205
    %v238 = vunpack.c.l.b16 %v206
    %v239 = vunpack.c.l.b16 %v207
    %v240 = vpack.c.b16 %v225, %v224
    %v241 = vpack.c.b16 %v227, %v226
    %v242 = vpack.c.b16 %v229, %v228
    %v243 = vpack.c.b16 %v231, %v230
    %v244 = vpack.c.b16 %v233, %v232
    %v245 = vpack.c.b16 %v235, %v234
    %v246 = vpack.c.b16 %v237, %v236
    %v247 = vpack.c.b16 %v239, %v238
    %256 = vmatprep.subr.bf16.mxu0 0
    %257 = vmatpush1.bf16.xpose.msra.mxu0 %v240
    %258 = vmatprep.subr.bf16.mxu0 0
    %259 = vmatpush1.bf16.xpose.msra.mxu0 %v241
    %260 = vmatprep.subr.bf16.mxu0 0
    %261 = vmatpush1.bf16.xpose.msra.mxu0 %v242
    %262 = vmatprep.subr.bf16.mxu0 0
    %263 = vmatpush1.bf16.xpose.msra.mxu0 %v243
    %264 = vmatprep.subr.bf16.mxu0 0
    %265 = vmatpush1.bf16.xpose.msra.mxu0 %v244
    %266 = vmatprep.subr.bf16.mxu0 0
    %267 = vmatpush1.bf16.xpose.msra.mxu0 %v245
    %268 = vmatprep.subr.bf16.mxu0 0
    %269 = vmatpush1.bf16.xpose.msra.mxu0 %v246
    %270 = vmatprep.subr.bf16.mxu0 0
    %271 = vmatpush1.bf16.xpose.msra.mxu0 %v247
    %272 = vmatprep.subr.bf16.mxu0 0
    %273 = vmatpush1.bf16.xpose.msra.mxu0 0
    %274 = vmatprep.subr.bf16.mxu0 0
    %275 = vmatpush1.bf16.xpose.msra.mxu0 0
    %276 = vmatprep.subr.bf16.mxu0 0
    %277 = vmatpush1.bf16.xpose.msra.mxu0 0
    %278 = vmatprep.subr.bf16.mxu0 0
    %279 = vmatpush1.bf16.xpose.msra.mxu0 0
    %280 = vmatprep.subr.bf16.mxu0 0
    %281 = vmatpush1.bf16.xpose.msra.mxu0 0
    %282 = vmatprep.subr.bf16.mxu0 0
    %283 = vmatpush1.bf16.xpose.msra.mxu0 0
    %284 = vmatprep.subr.bf16.mxu0 0
    %285 = vmatpush1.bf16.xpose.msra.mxu0 0
    %286 = vmatprep.subr.bf16.mxu0 0
    %287 = vmatpush1.bf16.xpose.msra.mxu0 0
    %288 = vmatprep.mubr.bf16.mxu0 0
    %289 = vmatmul.mubr.bf16.gmra.mrb[0].mxu0 %v191
    %v290 = vpop.f32.mrb[0].mxu0
    %v291 = vadd.f32 0.0, %v290
    %v292 = vpop.f32.mrb[0].mxu0
    %v293 = vpop.f32.mrb[0].mxu0
    %v294 = vpop.f32.mrb[0].mxu0
    %295 = vdwg.mxu0
    %v296 = vadd.f32 %v190, %v291
    %297 = vst [vmem:[#allocation3] sm:$0xff] %v296
    // Predicated region
    $region46: #{tpu_custom_call.1} parent=1 // pred_check
      %p298 = pneg %p76
    $region47: #{tpu_custom_call.1} parent=1 // pred_check_branch
      %300 = sbr.rel (%p298) target = $region49
    $region48: #{tpu_custom_call.1} parent=1 // pred_region
      %v301 = vld [vmem:[#allocation2] sm:$0xff]
      %v302 = vld [vmem:[%s4] sm:$0x1]
      %v303 = vld [vmem:[#allocation3] sm:$0xff]
      %v305 = vlaneseq
      %v306 = vshrl.u32 %v305, 7
      %v307 = vsub.s32 0, %v306
      %v308 = vrot.slane %v302, %v307
      %v310 = vmul.f32 %v308, %v303
      %v311 = vadd.f32 %v301, %v310
      %v312 = vld [vmem:[%s5] sm:$0x1]
      %v314 = vlaneseq
      %v315 = vshrl.u32 %v314, 7
      %v316 = vsub.s32 0, %v315
      %v317 = vrot.slane %v312, %v316
      %v319 = vadd.f32 %v311, %v317
      %320 = vst [vmem:[#allocation12] sm:$0xff] %v319
    $region49: #{tpu_custom_call.1} parent=1 // pred_fallthru
      _
    // Predicated region
    $region50: #{tpu_custom_call.1} parent=1 // pred_check
      _
    $region51: #{tpu_custom_call.1} parent=1 // pred_check_branch
      %322 = sbr.rel (0) target = $region53
    $region52: #{tpu_custom_call.1} parent=1 // pred_region
      %s324 = ssub.s32 128, 128
      %325 = vsyncadd [#allocation6], %s324
      %s327 = sshll.u32 [#allocation12], 4
      %s328 = int_to_ptr.vmem [resolvable:$true] %s327
      %330 = dma.vmem_to_hbm [thread:$0]  %s328, 128, %s6, [#allocation6]
    $region53: #{tpu_custom_call.1} parent=1 // pred_fallthru
      _
    // Predicated region
    $region54: #{tpu_custom_call.1} parent=1 // pred_check
      _
    $region55: #{tpu_custom_call.1} parent=1 // pred_check_branch
      %332 = sbr.rel (0) target = $region57
    $region56: #{tpu_custom_call.1} parent=1 // pred_region
      %333 = dma.done [#allocation6], 128
    $region57: #{tpu_custom_call.1} parent=1 // pred_fallthru
      _
    %334 = vsyncpa [#allocation5], 1
    %335 = vsyncpa [#allocation8], 1
    %336 = vsyncpa [#allocation11], 1
    %337 = vsyncpa [#allocation6], 1

</llo_original>
